<compile_context>
chip_gen: v5e
topology: v5e:2x2
jax: 0.10.0
libtpu: 0.0.40
codegen_flags: <defaults>
</compile_context>

<pallas_src>
import jax
import jax.numpy as jnp
import numpy as np
from jax import lax
from jax.experimental import pallas as pl
from jax.experimental.pallas import tpu as pltpu


def lstm_tagger_kernel(sent_ref, emb_ref, w_ih_ref, w_hh_ref, b_ref,
                       w_tag_ref, b_tag_ref, out_ref, hs_ref):
    """Whole forward (gather + LSTM recurrence + tag head + log_softmax) in VMEM.

    sent_ref:  (S, 1)  int32 token ids (VMEM)
    emb_ref:   (V, E)  embedding table (VMEM, bf16)
    w_ih_ref:  (E, 4H) input->gates weights (bf16, transposed torch weight_ih_l0)
    w_hh_ref:  (H, 4H) hidden->gates weights (bf16, transposed torch weight_hh_l0)
    b_ref:     (1, 4H) b_ih + b_hh (f32)
    w_tag_ref: (H, T)  hidden2tag weight (bf16, transposed)
    b_tag_ref: (1, T)  hidden2tag bias (f32)
    out_ref:   (S, T)  log_softmax(tag_space) over the tag axis
    hs_ref:    (S, H)  scratch: per-timestep hidden states
    """
    S = sent_ref.shape[0]
    V = emb_ref.shape[0]
    H = w_hh_ref.shape[0]

    # 1) Fused embedding lookup as a one-hot MXU matmul: (S,V)@(V,E).
    #    One-hot rows are exact in bf16 and accumulation is f32, so the result
    #    is exactly the bf16-rounded embedding rows (identical numerics to a
    #    gather followed by a bf16 cast), with no serial dynamic-slice chain.
    ids = sent_ref[...]                                               # (S, 1) i32
    one_hot = (ids == lax.broadcasted_iota(jnp.int32, (S, V), 1)
               ).astype(jnp.bfloat16)                                 # (S, V)
    x_bf = jnp.dot(one_hot, emb_ref[...],
                   preferred_element_type=jnp.float32
                   ).astype(jnp.bfloat16)                             # (S, E)

    # 2) Hoisted input projection: one batched (S,E)@(E,4H) matmul + bias,
    #    removed from the serial critical path of the recurrence.
    xproj = (jnp.dot(x_bf, w_ih_ref[...], preferred_element_type=jnp.float32)
             + b_ref[...])                                            # (S, 4H) f32

    w_hh = w_hh_ref[...]                                              # hoisted (bf16)

    # 3) Fully unrolled recurrence — pure latency chain at batch=1; each step is
    #    a single (1,H)@(H,4H) matmul plus full-row elementwise work.
    # TODO(synk): on v5e one could additionally pin W_hh in the MXU staging
    # registers (pltpu.matmul_push_rhs / matmul_acc_lhs) across the unrolled steps.
    h = jnp.zeros((1, H), jnp.float32)   # nn.LSTM default zero state
    c = jnp.zeros((1, H), jnp.float32)
    for t in range(S):
        gates = (jnp.dot(h.astype(jnp.bfloat16), w_hh,
                         preferred_element_type=jnp.float32)
                 + xproj[t:t + 1, :])                                 # (1, 4H) f32
        # Full-row activations (2 EUP passes over one 128-lane vreg row), then
        # slice i/f/g/o (PyTorch gate order).
        sig = jax.nn.sigmoid(gates)
        tnh = jnp.tanh(gates)
        i = sig[:, 0 * H:1 * H]
        f = sig[:, 1 * H:2 * H]
        g = tnh[:, 2 * H:3 * H]
        o = sig[:, 3 * H:4 * H]
        c = f * c + i * g
        h = o * jnp.tanh(c)
        hs_ref[t:t + 1, :] = h

    # 4) hidden2tag + numerically-stable log_softmax over the tag axis.
    tag_space = (jnp.dot(hs_ref[...].astype(jnp.bfloat16), w_tag_ref[...],
                         preferred_element_type=jnp.float32)
                 + b_tag_ref[...])                                    # (S, T)
    m = jnp.max(tag_space, axis=-1, keepdims=True)
    z = tag_space - m
    lse = jnp.log(jnp.sum(jnp.exp(z), axis=-1, keepdims=True))
    out_ref[...] = z - lse


@jax.jit
def lstm_tagger_forward(sentence, params):
    S = sentence.shape[0]
    V, E = params["embedding"].shape
    H = params["w_hh"].shape[0]
    T = params["w_tag"].shape[1]

    vmem = pl.BlockSpec(memory_space=pltpu.MemorySpace.VMEM)

    # MXU operands in bf16 (kernel accumulates in f32); biases stay f32.
    # In a real model these casts would be done once at parameter-load time.
    emb = params["embedding"].astype(jnp.bfloat16)
    w_ih = params["w_ih"].astype(jnp.bfloat16)
    w_hh = params["w_hh"].astype(jnp.bfloat16)
    w_tag = params["w_tag"].astype(jnp.bfloat16)

    # Whole-problem-in-VMEM design: everything here is a few KiB.  For long
    # sequences (especially v7x: 64 MiB VMEM / 32 MiB scoped default) tile S
    # with a grid ("arbitrary" S axis, carry h/c in scratch) or raise
    # vmem_limit_bytes via pltpu.CompilerParams.  A leading "parallel" sentence
    # axis would shard batched calls across v7x's two TensorCores; at batch=1
    # there is nothing to shard.
    return pl.pallas_call(
        lstm_tagger_kernel,
        out_shape=jax.ShapeDtypeStruct((S, T), jnp.float32),
        in_specs=[vmem, vmem, vmem, vmem, vmem, vmem, vmem],
        out_specs=vmem,
        scratch_shapes=[pltpu.VMEM((S, H), jnp.float32)],   # hidden states
    )(sentence.astype(jnp.int32).reshape(S, 1), emb,
      w_ih, w_hh, params["b"], w_tag, params["b_tag"])


def reference_forward(sentence, params):
    """Pure-JAX f32 reference mirroring PyTorch LSTMTagger semantics."""
    emb = params["embedding"][sentence].astype(jnp.float32)
    H = params["w_hh"].shape[0]

    def step(carry, x_t):
        h, c = carry
        gates = x_t @ params["w_ih"] + h @ params["w_hh"] + params["b"][0]
        i = jax.nn.sigmoid(gates[0 * H:1 * H])
        f = jax.nn.sigmoid(gates[1 * H:2 * H])
        g = jnp.tanh(gates[2 * H:3 * H])
        o = jax.nn.sigmoid(gates[3 * H:4 * H])
        c = f * c + i * g
        h = o * jnp.tanh(c)
        return (h, c), h

    (_, _), hs = lax.scan(step, (jnp.zeros(H), jnp.zeros(H)), emb)
    tag_space = hs @ params["w_tag"] + params["b_tag"][0]
    return jax.nn.log_softmax(tag_space, axis=-1)


def init_params(key, vocab_size, embedding_dim, hidden_dim, tagset_size):
    assert embedding_dim == hidden_dim, "forward() requires embedding_dim == hidden_dim"
    ks = jax.random.split(key, 7)
    H = hidden_dim
    k_lstm = 1.0 / np.sqrt(H)
    k_lin = 1.0 / np.sqrt(H)
    u = lambda k, shape, s: jax.random.uniform(k, shape, jnp.float32, -s, s)
    return {
        "embedding": jax.random.normal(ks[0], (vocab_size, embedding_dim), jnp.float32),
        "w_ih": u(ks[1], (embedding_dim, 4 * H), k_lstm),
        "w_hh": u(ks[2], (H, 4 * H), k_lstm),
        # b = b_ih + b_hh (torch keeps them separate; only their sum matters)
        "b": u(ks[3], (1, 4 * H), k_lstm) + u(ks[4], (1, 4 * H), k_lstm),
        "w_tag": u(ks[5], (H, tagset_size), k_lin),
        "b_tag": u(ks[6], (1, tagset_size), k_lin),
    }


if __name__ == "__main__":
    VOCAB_SIZE = 50
    EMBEDDING_DIM = 32
    HIDDEN_DIM = 32      # must equal EMBEDDING_DIM (see layout comment)
    TAGSET_SIZE = 8
    SEQ_LEN = 8

    key = jax.random.PRNGKey(0)
    k_par, k_sent = jax.random.split(key)
    params = init_params(k_par, VOCAB_SIZE, EMBEDDING_DIM, HIDDEN_DIM, TAGSET_SIZE)
    sentence = jax.random.randint(k_sent, (SEQ_LEN,), 0, VOCAB_SIZE, dtype=jnp.int32)

    tag_scores = lstm_tagger_forward(sentence, params)
    tag_scores = jax.block_until_ready(tag_scores)

    ref = reference_forward(sentence, params)
    # Tolerance relaxed vs. a pure-f32 implementation because MXU operands are
    # bf16 (accumulation is still f32); the f32 PyTorch-equivalent reference is kept.
    np.testing.assert_allclose(np.asarray(tag_scores), np.asarray(ref),
                               rtol=2e-2, atol=2e-2)
    assert tag_scores.shape == (SEQ_LEN, TAGSET_SIZE)
    print("KERNEL_OK")
</pallas_src>

<mosaic_0001>
module attributes {stable_mosaic.version = 11 : i64} {
  func.func @lstm_tagger_kernel(%arg0: memref<8x1xi32, #tpu.memory_space<vmem>>, %arg1: memref<50x32xbf16, #tpu.memory_space<vmem>>, %arg2: memref<32x128xbf16, #tpu.memory_space<vmem>>, %arg3: memref<32x128xbf16, #tpu.memory_space<vmem>>, %arg4: memref<1x128xf32, #tpu.memory_space<vmem>>, %arg5: memref<32x8xbf16, #tpu.memory_space<vmem>>, %arg6: memref<1x8xf32, #tpu.memory_space<vmem>>, %arg7: memref<8x8xf32, #tpu.memory_space<vmem>>, %arg8: memref<8x32xf32, #tpu.memory_space<vmem>>) attributes {dimension_semantics = [], scalar_prefetch = 0 : i64, scratch_operands = 1 : i64, tpu.core_type = #tpu.core_type<tc>} {
    %c0 = arith.constant 0 : index
    %c0_0 = arith.constant 0 : index
    %0 = vector.load %arg0[%c0, %c0_0] : memref<8x1xi32, #tpu.memory_space<vmem>>, vector<8x1xi32>
    %1 = tpu.iota {dimensions = array<i32: 1>} : vector<8x50xi32>
    %2 = vector.broadcast %0 : vector<8x1xi32> to vector<8x50xi32>
    %3 = arith.cmpi eq, %2, %1 : vector<8x50xi32>
    %4 = arith.extui %3 : vector<8x50xi1> to vector<8x50xi32>
    %5 = arith.sitofp %4 : vector<8x50xi32> to vector<8x50xf32>
    %6 = arith.truncf %5 : vector<8x50xf32> to vector<8x50xbf16>
    %c0_1 = arith.constant 0 : index
    %c0_2 = arith.constant 0 : index
    %7 = vector.load %arg1[%c0_1, %c0_2] : memref<50x32xbf16, #tpu.memory_space<vmem>>, vector<50x32xbf16>
    %cst = arith.constant dense<0.000000e+00> : vector<8x32xf32>
    %8 = tpu.matmul %6, %7, %cst {dimension_numbers = #tpu.dot_dimension_numbers<[1], [0], [0], [1], [0, 0, 1, 1], [], []>} : vector<8x50xbf16>, vector<50x32xbf16>, vector<8x32xf32> -> vector<8x32xf32>
    %9 = arith.truncf %8 : vector<8x32xf32> to vector<8x32xbf16>
    %c0_3 = arith.constant 0 : index
    %c0_4 = arith.constant 0 : index
    %10 = vector.load %arg2[%c0_3, %c0_4] : memref<32x128xbf16, #tpu.memory_space<vmem>>, vector<32x128xbf16>
    %cst_5 = arith.constant dense<0.000000e+00> : vector<8x128xf32>
    %11 = tpu.matmul %9, %10, %cst_5 {dimension_numbers = #tpu.dot_dimension_numbers<[1], [0], [0], [1], [0, 0, 1, 1], [], []>} : vector<8x32xbf16>, vector<32x128xbf16>, vector<8x128xf32> -> vector<8x128xf32>
    %c0_6 = arith.constant 0 : index
    %c0_7 = arith.constant 0 : index
    %12 = vector.load %arg4[%c0_6, %c0_7] : memref<1x128xf32, #tpu.memory_space<vmem>>, vector<1x128xf32>
    %13 = vector.broadcast %12 : vector<1x128xf32> to vector<8x128xf32>
    %14 = arith.addf %11, %13 : vector<8x128xf32>
    %c0_8 = arith.constant 0 : index
    %c0_9 = arith.constant 0 : index
    %15 = vector.load %arg3[%c0_8, %c0_9] : memref<32x128xbf16, #tpu.memory_space<vmem>>, vector<32x128xbf16>
    %cst_10 = arith.constant 0.000000e+00 : f32
    %16 = vector.broadcast %cst_10 : f32 to vector<1x32xf32>
    %cst_11 = arith.constant 0.000000e+00 : f32
    %17 = vector.broadcast %cst_11 : f32 to vector<1x32xf32>
    %18 = arith.truncf %16 : vector<1x32xf32> to vector<1x32xbf16>
    %cst_12 = arith.constant dense<0.000000e+00> : vector<1x128xf32>
    %19 = tpu.matmul %18, %15, %cst_12 {dimension_numbers = #tpu.dot_dimension_numbers<[1], [0], [0], [1], [0, 0, 1, 1], [], []>} : vector<1x32xbf16>, vector<32x128xbf16>, vector<1x128xf32> -> vector<1x128xf32>
    %20 = vector.extract_strided_slice %14 {offsets = [0, 0], sizes = [1, 128], strides = [1, 1]} : vector<8x128xf32> to vector<1x128xf32>
    %21 = arith.addf %19, %20 : vector<1x128xf32>
    %22 = arith.negf %21 : vector<1x128xf32>
    %23 = math.exp %22 : vector<1x128xf32>
    %cst_13 = arith.constant 1.000000e+00 : f32
    %24 = vector.broadcast %cst_13 : f32 to vector<1x128xf32>
    %25 = arith.addf %24, %23 : vector<1x128xf32>
    %26 = arith.divf %24, %25 : vector<1x128xf32>
    %27 = math.tanh %21 : vector<1x128xf32>
    %28 = vector.extract_strided_slice %26 {offsets = [0, 0], sizes = [1, 32], strides = [1, 1]} : vector<1x128xf32> to vector<1x32xf32>
    %29 = vector.extract_strided_slice %26 {offsets = [0, 32], sizes = [1, 32], strides = [1, 1]} : vector<1x128xf32> to vector<1x32xf32>
    %30 = vector.extract_strided_slice %27 {offsets = [0, 64], sizes = [1, 32], strides = [1, 1]} : vector<1x128xf32> to vector<1x32xf32>
    %31 = vector.extract_strided_slice %26 {offsets = [0, 96], sizes = [1, 32], strides = [1, 1]} : vector<1x128xf32> to vector<1x32xf32>
    %32 = arith.mulf %29, %17 : vector<1x32xf32>
    %33 = arith.mulf %28, %30 : vector<1x32xf32>
    %34 = arith.addf %32, %33 : vector<1x32xf32>
    %35 = math.tanh %34 : vector<1x32xf32>
    %36 = arith.mulf %31, %35 : vector<1x32xf32>
    %c0_14 = arith.constant 0 : index
    %c0_15 = arith.constant 0 : index
    %37 = vector.load %arg8[%c0_14, %c0_15] : memref<8x32xf32, #tpu.memory_space<vmem>>, vector<1x32xf32>
    tpu.vector_store %arg8[%c0_14, %c0_15], %36 {strides = array<i32>} : memref<8x32xf32, #tpu.memory_space<vmem>>, vector<1x32xf32>,
    %38 = arith.truncf %36 : vector<1x32xf32> to vector<1x32xbf16>
    %cst_16 = arith.constant dense<0.000000e+00> : vector<1x128xf32>
    %39 = tpu.matmul %38, %15, %cst_16 {dimension_numbers = #tpu.dot_dimension_numbers<[1], [0], [0], [1], [0, 0, 1, 1], [], []>} : vector<1x32xbf16>, vector<32x128xbf16>, vector<1x128xf32> -> vector<1x128xf32>
    %40 = vector.extract_strided_slice %14 {offsets = [1, 0], sizes = [1, 128], strides = [1, 1]} : vector<8x128xf32> to vector<1x128xf32>
    %41 = arith.addf %39, %40 : vector<1x128xf32>
    %42 = arith.negf %41 : vector<1x128xf32>
    %43 = math.exp %42 : vector<1x128xf32>
    %cst_17 = arith.constant 1.000000e+00 : f32
    %44 = vector.broadcast %cst_17 : f32 to vector<1x128xf32>
    %45 = arith.addf %44, %43 : vector<1x128xf32>
    %46 = arith.divf %44, %45 : vector<1x128xf32>
    %47 = math.tanh %41 : vector<1x128xf32>
    %48 = vector.extract_strided_slice %46 {offsets = [0, 0], sizes = [1, 32], strides = [1, 1]} : vector<1x128xf32> to vector<1x32xf32>
    %49 = vector.extract_strided_slice %46 {offsets = [0, 32], sizes = [1, 32], strides = [1, 1]} : vector<1x128xf32> to vector<1x32xf32>
    %50 = vector.extract_strided_slice %47 {offsets = [0, 64], sizes = [1, 32], strides = [1, 1]} : vector<1x128xf32> to vector<1x32xf32>
    %51 = vector.extract_strided_slice %46 {offsets = [0, 96], sizes = [1, 32], strides = [1, 1]} : vector<1x128xf32> to vector<1x32xf32>
    %52 = arith.mulf %49, %34 : vector<1x32xf32>
    %53 = arith.mulf %48, %50 : vector<1x32xf32>
    %54 = arith.addf %52, %53 : vector<1x32xf32>
    %55 = math.tanh %54 : vector<1x32xf32>
    %56 = arith.mulf %51, %55 : vector<1x32xf32>
    %c1 = arith.constant 1 : index
    %c0_18 = arith.constant 0 : index
    %57 = vector.load %arg8[%c1, %c0_18] : memref<8x32xf32, #tpu.memory_space<vmem>>, vector<1x32xf32>
    tpu.vector_store %arg8[%c1, %c0_18], %56 {strides = array<i32>} : memref<8x32xf32, #tpu.memory_space<vmem>>, vector<1x32xf32>,
    %58 = arith.truncf %56 : vector<1x32xf32> to vector<1x32xbf16>
    %cst_19 = arith.constant dense<0.000000e+00> : vector<1x128xf32>
    %59 = tpu.matmul %58, %15, %cst_19 {dimension_numbers = #tpu.dot_dimension_numbers<[1], [0], [0], [1], [0, 0, 1, 1], [], []>} : vector<1x32xbf16>, vector<32x128xbf16>, vector<1x128xf32> -> vector<1x128xf32>
    %60 = vector.extract_strided_slice %14 {offsets = [2, 0], sizes = [1, 128], strides = [1, 1]} : vector<8x128xf32> to vector<1x128xf32>
    %61 = arith.addf %59, %60 : vector<1x128xf32>
    %62 = arith.negf %61 : vector<1x128xf32>
    %63 = math.exp %62 : vector<1x128xf32>
    %cst_20 = arith.constant 1.000000e+00 : f32
    %64 = vector.broadcast %cst_20 : f32 to vector<1x128xf32>
    %65 = arith.addf %64, %63 : vector<1x128xf32>
    %66 = arith.divf %64, %65 : vector<1x128xf32>
    %67 = math.tanh %61 : vector<1x128xf32>
    %68 = vector.extract_strided_slice %66 {offsets = [0, 0], sizes = [1, 32], strides = [1, 1]} : vector<1x128xf32> to vector<1x32xf32>
    %69 = vector.extract_strided_slice %66 {offsets = [0, 32], sizes = [1, 32], strides = [1, 1]} : vector<1x128xf32> to vector<1x32xf32>
    %70 = vector.extract_strided_slice %67 {offsets = [0, 64], sizes = [1, 32], strides = [1, 1]} : vector<1x128xf32> to vector<1x32xf32>
    %71 = vector.extract_strided_slice %66 {offsets = [0, 96], sizes = [1, 32], strides = [1, 1]} : vector<1x128xf32> to vector<1x32xf32>
    %72 = arith.mulf %69, %54 : vector<1x32xf32>
    %73 = arith.mulf %68, %70 : vector<1x32xf32>
    %74 = arith.addf %72, %73 : vector<1x32xf32>
    %75 = math.tanh %74 : vector<1x32xf32>
    %76 = arith.mulf %71, %75 : vector<1x32xf32>
    %c2 = arith.constant 2 : index
    %c0_21 = arith.constant 0 : index
    %77 = vector.load %arg8[%c2, %c0_21] : memref<8x32xf32, #tpu.memory_space<vmem>>, vector<1x32xf32>
    tpu.vector_store %arg8[%c2, %c0_21], %76 {strides = array<i32>} : memref<8x32xf32, #tpu.memory_space<vmem>>, vector<1x32xf32>,
    %78 = arith.truncf %76 : vector<1x32xf32> to vector<1x32xbf16>
    %cst_22 = arith.constant dense<0.000000e+00> : vector<1x128xf32>
    %79 = tpu.matmul %78, %15, %cst_22 {dimension_numbers = #tpu.dot_dimension_numbers<[1], [0], [0], [1], [0, 0, 1, 1], [], []>} : vector<1x32xbf16>, vector<32x128xbf16>, vector<1x128xf32> -> vector<1x128xf32>
    %80 = vector.extract_strided_slice %14 {offsets = [3, 0], sizes = [1, 128], strides = [1, 1]} : vector<8x128xf32> to vector<1x128xf32>
    %81 = arith.addf %79, %80 : vector<1x128xf32>
    %82 = arith.negf %81 : vector<1x128xf32>
    %83 = math.exp %82 : vector<1x128xf32>
    %cst_23 = arith.constant 1.000000e+00 : f32
    %84 = vector.broadcast %cst_23 : f32 to vector<1x128xf32>
    %85 = arith.addf %84, %83 : vector<1x128xf32>
    %86 = arith.divf %84, %85 : vector<1x128xf32>
    %87 = math.tanh %81 : vector<1x128xf32>
    %88 = vector.extract_strided_slice %86 {offsets = [0, 0], sizes = [1, 32], strides = [1, 1]} : vector<1x128xf32> to vector<1x32xf32>
    %89 = vector.extract_strided_slice %86 {offsets = [0, 32], sizes = [1, 32], strides = [1, 1]} : vector<1x128xf32> to vector<1x32xf32>
    %90 = vector.extract_strided_slice %87 {offsets = [0, 64], sizes = [1, 32], strides = [1, 1]} : vector<1x128xf32> to vector<1x32xf32>
    %91 = vector.extract_strided_slice %86 {offsets = [0, 96], sizes = [1, 32], strides = [1, 1]} : vector<1x128xf32> to vector<1x32xf32>
    %92 = arith.mulf %89, %74 : vector<1x32xf32>
    %93 = arith.mulf %88, %90 : vector<1x32xf32>
    %94 = arith.addf %92, %93 : vector<1x32xf32>
    %95 = math.tanh %94 : vector<1x32xf32>
    %96 = arith.mulf %91, %95 : vector<1x32xf32>
    %c3 = arith.constant 3 : index
    %c0_24 = arith.constant 0 : index
    %97 = vector.load %arg8[%c3, %c0_24] : memref<8x32xf32, #tpu.memory_space<vmem>>, vector<1x32xf32>
    tpu.vector_store %arg8[%c3, %c0_24], %96 {strides = array<i32>} : memref<8x32xf32, #tpu.memory_space<vmem>>, vector<1x32xf32>,
    %98 = arith.truncf %96 : vector<1x32xf32> to vector<1x32xbf16>
    %cst_25 = arith.constant dense<0.000000e+00> : vector<1x128xf32>
    %99 = tpu.matmul %98, %15, %cst_25 {dimension_numbers = #tpu.dot_dimension_numbers<[1], [0], [0], [1], [0, 0, 1, 1], [], []>} : vector<1x32xbf16>, vector<32x128xbf16>, vector<1x128xf32> -> vector<1x128xf32>
    %100 = vector.extract_strided_slice %14 {offsets = [4, 0], sizes = [1, 128], strides = [1, 1]} : vector<8x128xf32> to vector<1x128xf32>
    %101 = arith.addf %99, %100 : vector<1x128xf32>
    %102 = arith.negf %101 : vector<1x128xf32>
    %103 = math.exp %102 : vector<1x128xf32>
    %cst_26 = arith.constant 1.000000e+00 : f32
    %104 = vector.broadcast %cst_26 : f32 to vector<1x128xf32>
    %105 = arith.addf %104, %103 : vector<1x128xf32>
    %106 = arith.divf %104, %105 : vector<1x128xf32>
    %107 = math.tanh %101 : vector<1x128xf32>
    %108 = vector.extract_strided_slice %106 {offsets = [0, 0], sizes = [1, 32], strides = [1, 1]} : vector<1x128xf32> to vector<1x32xf32>
    %109 = vector.extract_strided_slice %106 {offsets = [0, 32], sizes = [1, 32], strides = [1, 1]} : vector<1x128xf32> to vector<1x32xf32>
    %110 = vector.extract_strided_slice %107 {offsets = [0, 64], sizes = [1, 32], strides = [1, 1]} : vector<1x128xf32> to vector<1x32xf32>
    %111 = vector.extract_strided_slice %106 {offsets = [0, 96], sizes = [1, 32], strides = [1, 1]} : vector<1x128xf32> to vector<1x32xf32>
    %112 = arith.mulf %109, %94 : vector<1x32xf32>
    %113 = arith.mulf %108, %110 : vector<1x32xf32>
    %114 = arith.addf %112, %113 : vector<1x32xf32>
    %115 = math.tanh %114 : vector<1x32xf32>
    %116 = arith.mulf %111, %115 : vector<1x32xf32>
    %c4 = arith.constant 4 : index
    %c0_27 = arith.constant 0 : index
    %117 = vector.load %arg8[%c4, %c0_27] : memref<8x32xf32, #tpu.memory_space<vmem>>, vector<1x32xf32>
    tpu.vector_store %arg8[%c4, %c0_27], %116 {strides = array<i32>} : memref<8x32xf32, #tpu.memory_space<vmem>>, vector<1x32xf32>,
    %118 = arith.truncf %116 : vector<1x32xf32> to vector<1x32xbf16>
    %cst_28 = arith.constant dense<0.000000e+00> : vector<1x128xf32>
    %119 = tpu.matmul %118, %15, %cst_28 {dimension_numbers = #tpu.dot_dimension_numbers<[1], [0], [0], [1], [0, 0, 1, 1], [], []>} : vector<1x32xbf16>, vector<32x128xbf16>, vector<1x128xf32> -> vector<1x128xf32>
    %120 = vector.extract_strided_slice %14 {offsets = [5, 0], sizes = [1, 128], strides = [1, 1]} : vector<8x128xf32> to vector<1x128xf32>
    %121 = arith.addf %119, %120 : vector<1x128xf32>
    %122 = arith.negf %121 : vector<1x128xf32>
    %123 = math.exp %122 : vector<1x128xf32>
    %cst_29 = arith.constant 1.000000e+00 : f32
    %124 = vector.broadcast %cst_29 : f32 to vector<1x128xf32>
    %125 = arith.addf %124, %123 : vector<1x128xf32>
    %126 = arith.divf %124, %125 : vector<1x128xf32>
    %127 = math.tanh %121 : vector<1x128xf32>
    %128 = vector.extract_strided_slice %126 {offsets = [0, 0], sizes = [1, 32], strides = [1, 1]} : vector<1x128xf32> to vector<1x32xf32>
    %129 = vector.extract_strided_slice %126 {offsets = [0, 32], sizes = [1, 32], strides = [1, 1]} : vector<1x128xf32> to vector<1x32xf32>
    %130 = vector.extract_strided_slice %127 {offsets = [0, 64], sizes = [1, 32], strides = [1, 1]} : vector<1x128xf32> to vector<1x32xf32>
    %131 = vector.extract_strided_slice %126 {offsets = [0, 96], sizes = [1, 32], strides = [1, 1]} : vector<1x128xf32> to vector<1x32xf32>
    %132 = arith.mulf %129, %114 : vector<1x32xf32>
    %133 = arith.mulf %128, %130 : vector<1x32xf32>
    %134 = arith.addf %132, %133 : vector<1x32xf32>
    %135 = math.tanh %134 : vector<1x32xf32>
    %136 = arith.mulf %131, %135 : vector<1x32xf32>
    %c5 = arith.constant 5 : index
    %c0_30 = arith.constant 0 : index
    %137 = vector.load %arg8[%c5, %c0_30] : memref<8x32xf32, #tpu.memory_space<vmem>>, vector<1x32xf32>
    tpu.vector_store %arg8[%c5, %c0_30], %136 {strides = array<i32>} : memref<8x32xf32, #tpu.memory_space<vmem>>, vector<1x32xf32>,
    %138 = arith.truncf %136 : vector<1x32xf32> to vector<1x32xbf16>
    %cst_31 = arith.constant dense<0.000000e+00> : vector<1x128xf32>
    %139 = tpu.matmul %138, %15, %cst_31 {dimension_numbers = #tpu.dot_dimension_numbers<[1], [0], [0], [1], [0, 0, 1, 1], [], []>} : vector<1x32xbf16>, vector<32x128xbf16>, vector<1x128xf32> -> vector<1x128xf32>
    %140 = vector.extract_strided_slice %14 {offsets = [6, 0], sizes = [1, 128], strides = [1, 1]} : vector<8x128xf32> to vector<1x128xf32>
    %141 = arith.addf %139, %140 : vector<1x128xf32>
    %142 = arith.negf %141 : vector<1x128xf32>
    %143 = math.exp %142 : vector<1x128xf32>
    %cst_32 = arith.constant 1.000000e+00 : f32
    %144 = vector.broadcast %cst_32 : f32 to vector<1x128xf32>
    %145 = arith.addf %144, %143 : vector<1x128xf32>
    %146 = arith.divf %144, %145 : vector<1x128xf32>
    %147 = math.tanh %141 : vector<1x128xf32>
    %148 = vector.extract_strided_slice %146 {offsets = [0, 0], sizes = [1, 32], strides = [1, 1]} : vector<1x128xf32> to vector<1x32xf32>
    %149 = vector.extract_strided_slice %146 {offsets = [0, 32], sizes = [1, 32], strides = [1, 1]} : vector<1x128xf32> to vector<1x32xf32>
    %150 = vector.extract_strided_slice %147 {offsets = [0, 64], sizes = [1, 32], strides = [1, 1]} : vector<1x128xf32> to vector<1x32xf32>
    %151 = vector.extract_strided_slice %146 {offsets = [0, 96], sizes = [1, 32], strides = [1, 1]} : vector<1x128xf32> to vector<1x32xf32>
    %152 = arith.mulf %149, %134 : vector<1x32xf32>
    %153 = arith.mulf %148, %150 : vector<1x32xf32>
    %154 = arith.addf %152, %153 : vector<1x32xf32>
    %155 = math.tanh %154 : vector<1x32xf32>
    %156 = arith.mulf %151, %155 : vector<1x32xf32>
    %c6 = arith.constant 6 : index
    %c0_33 = arith.constant 0 : index
    %157 = vector.load %arg8[%c6, %c0_33] : memref<8x32xf32, #tpu.memory_space<vmem>>, vector<1x32xf32>
    tpu.vector_store %arg8[%c6, %c0_33], %156 {strides = array<i32>} : memref<8x32xf32, #tpu.memory_space<vmem>>, vector<1x32xf32>,
    %158 = arith.truncf %156 : vector<1x32xf32> to vector<1x32xbf16>
    %cst_34 = arith.constant dense<0.000000e+00> : vector<1x128xf32>
    %159 = tpu.matmul %158, %15, %cst_34 {dimension_numbers = #tpu.dot_dimension_numbers<[1], [0], [0], [1], [0, 0, 1, 1], [], []>} : vector<1x32xbf16>, vector<32x128xbf16>, vector<1x128xf32> -> vector<1x128xf32>
    %160 = vector.extract_strided_slice %14 {offsets = [7, 0], sizes = [1, 128], strides = [1, 1]} : vector<8x128xf32> to vector<1x128xf32>
    %161 = arith.addf %159, %160 : vector<1x128xf32>
    %162 = arith.negf %161 : vector<1x128xf32>
    %163 = math.exp %162 : vector<1x128xf32>
    %cst_35 = arith.constant 1.000000e+00 : f32
    %164 = vector.broadcast %cst_35 : f32 to vector<1x128xf32>
    %165 = arith.addf %164, %163 : vector<1x128xf32>
    %166 = arith.divf %164, %165 : vector<1x128xf32>
    %167 = math.tanh %161 : vector<1x128xf32>
    %168 = vector.extract_strided_slice %166 {offsets = [0, 0], sizes = [1, 32], strides = [1, 1]} : vector<1x128xf32> to vector<1x32xf32>
    %169 = vector.extract_strided_slice %166 {offsets = [0, 32], sizes = [1, 32], strides = [1, 1]} : vector<1x128xf32> to vector<1x32xf32>
    %170 = vector.extract_strided_slice %167 {offsets = [0, 64], sizes = [1, 32], strides = [1, 1]} : vector<1x128xf32> to vector<1x32xf32>
    %171 = vector.extract_strided_slice %166 {offsets = [0, 96], sizes = [1, 32], strides = [1, 1]} : vector<1x128xf32> to vector<1x32xf32>
    %172 = arith.mulf %169, %154 : vector<1x32xf32>
    %173 = arith.mulf %168, %170 : vector<1x32xf32>
    %174 = arith.addf %172, %173 : vector<1x32xf32>
    %175 = math.tanh %174 : vector<1x32xf32>
    %176 = arith.mulf %171, %175 : vector<1x32xf32>
    %c7 = arith.constant 7 : index
    %c0_36 = arith.constant 0 : index
    %177 = vector.load %arg8[%c7, %c0_36] : memref<8x32xf32, #tpu.memory_space<vmem>>, vector<1x32xf32>
    tpu.vector_store %arg8[%c7, %c0_36], %176 {strides = array<i32>} : memref<8x32xf32, #tpu.memory_space<vmem>>, vector<1x32xf32>,
    %c0_37 = arith.constant 0 : index
    %c0_38 = arith.constant 0 : index
    %178 = vector.load %arg8[%c0_37, %c0_38] : memref<8x32xf32, #tpu.memory_space<vmem>>, vector<8x32xf32>
    %179 = arith.truncf %178 : vector<8x32xf32> to vector<8x32xbf16>
    %c0_39 = arith.constant 0 : index
    %c0_40 = arith.constant 0 : index
    %180 = vector.load %arg5[%c0_39, %c0_40] : memref<32x8xbf16, #tpu.memory_space<vmem>>, vector<32x8xbf16>
    %cst_41 = arith.constant dense<0.000000e+00> : vector<8x8xf32>
    %181 = tpu.matmul %179, %180, %cst_41 {dimension_numbers = #tpu.dot_dimension_numbers<[1], [0], [0], [1], [0, 0, 1, 1], [], []>} : vector<8x32xbf16>, vector<32x8xbf16>, vector<8x8xf32> -> vector<8x8xf32>
    %c0_42 = arith.constant 0 : index
    %c0_43 = arith.constant 0 : index
    %182 = vector.load %arg6[%c0_42, %c0_43] : memref<1x8xf32, #tpu.memory_space<vmem>>, vector<1x8xf32>
    %183 = vector.broadcast %182 : vector<1x8xf32> to vector<8x8xf32>
    %184 = arith.addf %181, %183 : vector<8x8xf32>
    %cst_44 = arith.constant dense<0xFF800000> : vector<8xf32>
    %185 = vector.multi_reduction <maximumf>, %184, %cst_44 [1] : vector<8x8xf32> to vector<8xf32>
    %186 = vector.shape_cast %185 : vector<8xf32> to vector<8x1xf32>
    %187 = vector.broadcast %186 : vector<8x1xf32> to vector<8x8xf32>
    %188 = arith.subf %184, %187 : vector<8x8xf32>
    %189 = math.exp %188 : vector<8x8xf32>
    %cst_45 = arith.constant dense<0.000000e+00> : vector<8xf32>
    %190 = vector.multi_reduction <add>, %189, %cst_45 [1] : vector<8x8xf32> to vector<8xf32>
    %191 = vector.shape_cast %190 : vector<8xf32> to vector<8x1xf32>
    %192 = math.log %191 : vector<8x1xf32>
    %193 = vector.broadcast %192 : vector<8x1xf32> to vector<8x8xf32>
    %194 = arith.subf %188, %193 : vector<8x8xf32>
    %c0_46 = arith.constant 0 : index
    %c0_47 = arith.constant 0 : index
    %195 = vector.load %arg7[%c0_46, %c0_47] : memref<8x8xf32, #tpu.memory_space<vmem>>, vector<8x8xf32>
    tpu.vector_store %arg7[%c0_46, %c0_47], %194 {strides = array<i32>} : memref<8x8xf32, #tpu.memory_space<vmem>>, vector<8x8xf32>,
    return
  }
}

</mosaic_0001>

<llo_original>
// kernel: lstm_tagger_forward.1
$region0: #{lstm_tagger_forward.1}
  #allocation0 [shape = 'u32[]', space=smem, size = 0x4, offset = 0x4, fixed_abs, tag = 'smem constant byte address 0x4 - core index']
  #allocation1 [shape = 'u32[72,128]{1,0:T(1,128)}', space=vmem, size = 0x9000, scoped, tag = 'internal scratch']
  #allocation2 [shape = 'f32[8,32]{1,0:T(8,128)}', space=vmem, size = 0x1000, scoped, tag = 'scratch operand']
  %s0 = inlined_call_operand.vmem [shape: s32[8,1], index: 0, kind: input, shape index: {}]
  %s1 = inlined_call_operand.vmem [shape: bf16[50,32], index: 1, kind: input, shape index: {}]
  %s2 = inlined_call_operand.vmem [shape: bf16[32,128], index: 2, kind: input, shape index: {}]
  %s3 = inlined_call_operand.vmem [shape: bf16[32,128], index: 3, kind: input, shape index: {}]
  %s4 = inlined_call_operand.vmem [shape: f32[1,128], index: 4, kind: input, shape index: {}]
  %s5 = inlined_call_operand.vmem [shape: bf16[32,8], index: 5, kind: input, shape index: {}]
  %s6 = inlined_call_operand.vmem [shape: f32[1,8], index: 6, kind: input, shape index: {}]
  %s7 = inlined_call_operand.hbm [shape: f32[8,8], index: 7, kind: output, shape index: {}]
  %s8 = sld [smem:[#allocation0]]
  $region38: #{lstm_tagger_forward.1} parent=0
    _
  %s10 = ssub.s32 1, %s8
  %s11 = scalar_select 0, %s10, %s8
  $region1: #{lstm_tagger_forward.1} parent=0
    #allocation3 [shape = 'u8[4096]{0}', space=vmem, size = 0x1000, scoped, tag = 'output window, operand 0, single buffered']
    #allocation4 [shape = 's32[1]{0}', space=sflag, size = 0x4, scoped, tag = 'scoped memory for lstm_tagger_forward.1']
    %12 = vsyncpa [#allocation4], 0
    // Predicated region
    $region2: #{lstm_tagger_forward.1} parent=1 // pred_check
      _
    $region3: #{lstm_tagger_forward.1} parent=1 // pred_check_branch
      %14 = sbr.rel (0) target = $region5
    $region4: #{lstm_tagger_forward.1} parent=1 // pred_region
      _
    $region5: #{lstm_tagger_forward.1} parent=1 // pred_fallthru
      _
    // Predicated region
    $region6: #{lstm_tagger_forward.1} parent=1 // pred_check
      _
    $region7: #{lstm_tagger_forward.1} parent=1 // pred_check_branch
      %16 = sbr.rel (0) target = $region9
    $region8: #{lstm_tagger_forward.1} parent=1 // pred_region
      _
    $region9: #{lstm_tagger_forward.1} parent=1 // pred_fallthru
      _
    // Predicated region
    $region10: #{lstm_tagger_forward.1} parent=1 // pred_check
      _
    $region11: #{lstm_tagger_forward.1} parent=1 // pred_check_branch
      %18 = sbr.rel (0) target = $region13
    $region12: #{lstm_tagger_forward.1} parent=1 // pred_region
      _
    $region13: #{lstm_tagger_forward.1} parent=1 // pred_fallthru
      _
    // Predicated region
    $region14: #{lstm_tagger_forward.1} parent=1 // pred_check
      _
    $region15: #{lstm_tagger_forward.1} parent=1 // pred_check_branch
      %20 = sbr.rel (0) target = $region17
    $region16: #{lstm_tagger_forward.1} parent=1 // pred_region
      _
    $region17: #{lstm_tagger_forward.1} parent=1 // pred_fallthru
      _
    // Predicated region
    $region18: #{lstm_tagger_forward.1} parent=1 // pred_check
      _
    $region19: #{lstm_tagger_forward.1} parent=1 // pred_check_branch
      %22 = sbr.rel (0) target = $region21
    $region20: #{lstm_tagger_forward.1} parent=1 // pred_region
      _
    $region21: #{lstm_tagger_forward.1} parent=1 // pred_fallthru
      _
    // Predicated region
    $region22: #{lstm_tagger_forward.1} parent=1 // pred_check
      _
    $region23: #{lstm_tagger_forward.1} parent=1 // pred_check_branch
      %24 = sbr.rel (0) target = $region25
    $region24: #{lstm_tagger_forward.1} parent=1 // pred_region
      _
    $region25: #{lstm_tagger_forward.1} parent=1 // pred_fallthru
      _
    // Predicated region
    $region26: #{lstm_tagger_forward.1} parent=1 // pred_check
      _
    $region27: #{lstm_tagger_forward.1} parent=1 // pred_check_branch
      %26 = sbr.rel (0) target = $region29
    $region28: #{lstm_tagger_forward.1} parent=1 // pred_region
      _
    $region29: #{lstm_tagger_forward.1} parent=1 // pred_fallthru
      _
    %v28 = vld [vmem:[%s0] sm:$0xff]
    %v29 = vlaneseq
    %v30 = vand.u32 %v29, 127
    %31 = vset.pattern.permute.xlu0 0
    %32 = vperm.xlu0 %31, %v28
    %v33 = vpop.permute.xlu0 %32
    %vm34 = vcmp.eq.s32.totalorder %v33, %v30
    %v35 = vsel %vm34, 1, 0
    %v36 = vcvt.s32.f32 %v35
    %v37 = vpack.c.bf16 %v36, %v36
    %v38 = vld [vmem:[%s1] sm:$0xf]
    %v39 = vld [vmem:[%s1 + $0x4] sm:$0xf]
    %v40 = vld [vmem:[%s1 + $0x8] sm:$0xf]
    %v41 = vld [vmem:[%s1 + $0xc] sm:$0xf]
    %v42 = vld [vmem:[%s1 + $0x10] sm:$0xf]
    %v43 = vld [vmem:[%s1 + $0x14] sm:$0xf]
    %v44 = vld [vmem:[%s1 + $0x18] sm:$0x1]
    %v52 = vunpack.c.l.b16 %v38
    %v53 = vunpack.c.l.b16 %v39
    %v54 = vunpack.c.l.b16 %v40
    %v55 = vunpack.c.l.b16 %v41
    %v56 = vunpack.c.l.b16 %v42
    %v57 = vunpack.c.l.b16 %v43
    %v58 = vunpack.c.l.b16 %v44
    %v59 = vpack.c.b16 %v53, %v52
    %v60 = vpack.c.b16 %v55, %v54
    %v61 = vpack.c.b16 %v57, %v56
    %v62 = vpack.c.b16 %v58, %v58
    %vm66 = vcmask 408576
    %v68 = vsel %vm66, %v37, 0
    %vm70 = vcmask 1040384
    %v72 = vsel %vm70, %v62, 0
    %74 = vmatpush.bf16.msra.mxu0 0
    %75 = vmatpush.bf16.msra.mxu0 0
    %76 = vmatpush.bf16.msra.mxu0 0
    %77 = vmatpush.bf16.msra.mxu0 0
    %78 = vmatpush.bf16.msra.mxu0 %v72
    %79 = vmatpush.bf16.msra.mxu0 %v61
    %80 = vmatpush.bf16.msra.mxu0 %v60
    %81 = vmatpush.bf16.msra.mxu0 %v59
    %82 = vmatmul.bf16.gmra.mxu0 %v68
    %v83 = vpop.f32.mrf.mxu0
    %v84 = vadd.f32 0.0, %v83
    %v85 = vpop.f32.mrf.mxu0
    %86 = vdwg.mxu0
    %v87 = vpack.c.bf16 %v84, %v84
    %v88 = vld [vmem:[%s2] sm:$0xf]
    %v89 = vld [vmem:[%s2 + $0x4] sm:$0xf]
    %v90 = vld [vmem:[%s2 + $0x8] sm:$0xf]
    %v91 = vld [vmem:[%s2 + $0xc] sm:$0xf]
    %v92 = vld [vmem:[%s4] sm:$0x1]
    %v94 = vperm.slane %v92, 0
    %v100 = vunpack.c.l.b16 %v88
    %v101 = vunpack.c.l.b16 %v89
    %v102 = vunpack.c.l.b16 %v90
    %v103 = vunpack.c.l.b16 %v91
    %v104 = vpack.c.b16 %v101, %v100
    %v105 = vpack.c.b16 %v103, %v102
    %vm108 = vcmask 261120
    %v110 = vsel %vm108, %v87, 0
    %112 = vmatpush.bf16.msra.mxu0 0
    %113 = vmatpush.bf16.msra.mxu0 0
    %114 = vmatpush.bf16.msra.mxu0 0
    %115 = vmatpush.bf16.msra.mxu0 0
    %116 = vmatpush.bf16.msra.mxu0 0
    %117 = vmatpush.bf16.msra.mxu0 0
    %118 = vmatpush.bf16.msra.mxu0 %v105
    %119 = vmatpush.bf16.msra.mxu0 %v104
    %120 = vmatmul.bf16.gmra.mxu0 %v110
    %v121 = vpop.f32.mrf.mxu0
    %v122 = vadd.f32 %v94, %v121
    %v123 = vpop.f32.mrf.mxu0
    %124 = vdwg.mxu0
    %v125 = vld [vmem:[%s3] sm:$0xf]
    %v126 = vld [vmem:[%s3 + $0x4] sm:$0xf]
    %v127 = vld [vmem:[%s3 + $0x8] sm:$0xf]
    %v128 = vld [vmem:[%s3 + $0xc] sm:$0xf]
    %v133 = vunpack.c.l.b16 %v125
    %v134 = vunpack.c.l.b16 %v126
    %v135 = vunpack.c.l.b16 %v127
    %v136 = vunpack.c.l.b16 %v128
    %v137 = vpack.c.b16 %v134, %v133
    %v138 = vpack.c.b16 %v136, %v135
    %v142 = vsel %vm108, 0, 0
    %144 = vmatpush.bf16.msra.mxu0 0
    %145 = vmatpush.bf16.msra.mxu0 0
    %146 = vmatpush.bf16.msra.mxu0 0
    %147 = vmatpush.bf16.msra.mxu0 0
    %148 = vmatpush.bf16.msra.mxu0 0
    %149 = vmatpush.bf16.msra.mxu0 0
    %150 = vmatpush.bf16.msra.mxu0 %v138
    %151 = vmatpush.bf16.msra.mxu0 %v137
    %152 = vmatmul.bf16.gmra.mxu0 %v142
    %v153 = vpop.f32.mrf.mxu0
    %v154 = vadd.f32 %v122, %v153
    %v155 = vpop.f32.mrf.mxu0
    %156 = vdwg.mxu0
    %v157 = vxor.u32 %v154, 2147483648
    %v158 = vmul.f32 %v157, 1.442695
    %v159 = vpow.pop %v158
    %v160 = vadd.f32 %v159, 1.0
    %v161 = vrcp.pop %v160
    %v162 = vmul.f32 %v160, %v161
    %v163 = vsub.f32 1.0, %v162
    %v164 = vmul.f32 %v161, %v163
    %v165 = vadd.f32 %v161, %v164
    %vm166 = vweird.f32 %v160
    %vm167 = vweird.f32 %v161
    %vm168 = vmor %vm166, %vm167
    %v169 = vsel %vm168, %v161, %v165
    %v170 = vand.u32 2147483647, %v160
    %vm171 = vcmp.eq.f32.partialorder %v170, 8.507059e+37
    %v172 = vand.u32 %v160, 2147483648
    %v173 = vor.u32 1.1754944e-38, %v172
    %v174 = vsel %vm171, %v173, %v169
    %v175 = vmul.f32 1.0, %v174
    %v176 = vtanh.pop %v154
    %v177 = vmul.f32 %v175, 0.0
    %179 = vrot.lane.b32.xlu0 %v176, 64
    %v180 = vpop.permute.xlu0 %179
    %v182 = vmul.f32 %v175, %v180
    %184 = vrot.lane.b32.xlu0 %v182, 32
    %v185 = vpop.permute.xlu0 %184
    %v187 = vadd.f32 %v177, %v185
    %v188 = vtanh.pop %v187
    %190 = vrot.lane.b32.xlu0 %v188, 64
    %v191 = vpop.permute.xlu0 %190
    %v193 = vmul.f32 %v175, %v191
    %195 = vrot.lane.b32.xlu0 %v193, 32
    %v196 = vpop.permute.xlu0 %195
    %vm198 = vcmask 253952
    %199 = vst.msk [vmem:[#allocation2] sm:$0x1] %vm198, %v196
    %v200 = vpack.c.bf16 %v193, %v193
    %202 = vrot.lane.b32.xlu0 %v200, 32
    %v203 = vpop.permute.xlu0 %202
    %v205 = vrot.slane %v122, 1
    %v208 = vsel %vm108, %v203, 0
    %210 = vmatpush.bf16.msra.mxu0 0
    %211 = vmatpush.bf16.msra.mxu0 0
    %212 = vmatpush.bf16.msra.mxu0 0
    %213 = vmatpush.bf16.msra.mxu0 0
    %214 = vmatpush.bf16.msra.mxu0 0
    %215 = vmatpush.bf16.msra.mxu0 0
    %216 = vmatpush.bf16.msra.mxu0 %v138
    %217 = vmatpush.bf16.msra.mxu0 %v137
    %218 = vmatmul.bf16.gmra.mxu0 %v208
    %v219 = vpop.f32.mrf.mxu0
    %v220 = vadd.f32 %v205, %v219
    %v221 = vpop.f32.mrf.mxu0
    %222 = vdwg.mxu0
    %v223 = vxor.u32 %v220, 2147483648
    %v224 = vmul.f32 %v223, 1.442695
    %v225 = vpow.pop %v224
    %v226 = vadd.f32 %v225, 1.0
    %v227 = vrcp.pop %v226
    %v228 = vmul.f32 %v226, %v227
    %v229 = vsub.f32 1.0, %v228
    %v230 = vmul.f32 %v227, %v229
    %v231 = vadd.f32 %v227, %v230
    %vm232 = vweird.f32 %v226
    %vm233 = vweird.f32 %v227
    %vm234 = vmor %vm232, %vm233
    %v235 = vsel %vm234, %v227, %v231
    %v236 = vand.u32 2147483647, %v226
    %vm237 = vcmp.eq.f32.partialorder %v236, 8.507059e+37
    %v238 = vand.u32 %v226, 2147483648
    %v239 = vor.u32 1.1754944e-38, %v238
    %v240 = vsel %vm237, %v239, %v235
    %v241 = vmul.f32 1.0, %v240
    %v242 = vtanh.pop %v220
    %v243 = vmul.f32 %v241, %v187
    %245 = vrot.lane.b32.xlu0 %v242, 64
    %v246 = vpop.permute.xlu0 %245
    %v248 = vmul.f32 %v241, %v246
    %250 = vrot.lane.b32.xlu0 %v248, 32
    %v251 = vpop.permute.xlu0 %250
    %v253 = vadd.f32 %v243, %v251
    %v254 = vtanh.pop %v253
    %256 = vrot.lane.b32.xlu0 %v254, 64
    %v257 = vpop.permute.xlu0 %256
    %v259 = vmul.f32 %v241, %v257
    %261 = vrot.lane.b32.xlu0 %v259, 32
    %v262 = vpop.permute.xlu0 %261
    %264 = vst.msk [vmem:[#allocation2 + $0x1] sm:$0x1] %vm198, %v262
    %v265 = vpack.c.bf16 %v259, %v259
    %267 = vrot.lane.b32.xlu0 %v265, 32
    %v268 = vpop.permute.xlu0 %267
    %v269 = vrot.slane %v122, 2
    %v272 = vsel %vm108, %v268, 0
    %274 = vmatpush.bf16.msra.mxu0 0
    %275 = vmatpush.bf16.msra.mxu0 0
    %276 = vmatpush.bf16.msra.mxu0 0
    %277 = vmatpush.bf16.msra.mxu0 0
    %278 = vmatpush.bf16.msra.mxu0 0
    %279 = vmatpush.bf16.msra.mxu0 0
    %280 = vmatpush.bf16.msra.mxu0 %v138
    %281 = vmatpush.bf16.msra.mxu0 %v137
    %282 = vmatmul.bf16.gmra.mxu0 %v272
    %v283 = vpop.f32.mrf.mxu0
    %v284 = vadd.f32 %v269, %v283
    %v285 = vpop.f32.mrf.mxu0
    %286 = vdwg.mxu0
    %v287 = vxor.u32 %v284, 2147483648
    %v288 = vmul.f32 %v287, 1.442695
    %v289 = vpow.pop %v288
    %v290 = vadd.f32 %v289, 1.0
    %v291 = vrcp.pop %v290
    %v292 = vmul.f32 %v290, %v291
    %v293 = vsub.f32 1.0, %v292
    %v294 = vmul.f32 %v291, %v293
    %v295 = vadd.f32 %v291, %v294
    %vm296 = vweird.f32 %v290
    %vm297 = vweird.f32 %v291
    %vm298 = vmor %vm296, %vm297
    %v299 = vsel %vm298, %v291, %v295
    %v300 = vand.u32 2147483647, %v290
    %vm301 = vcmp.eq.f32.partialorder %v300, 8.507059e+37
    %v302 = vand.u32 %v290, 2147483648
    %v303 = vor.u32 1.1754944e-38, %v302
    %v304 = vsel %vm301, %v303, %v299
    %v305 = vmul.f32 1.0, %v304
    %v306 = vtanh.pop %v284
    %v307 = vmul.f32 %v305, %v253
    %309 = vrot.lane.b32.xlu0 %v306, 64
    %v310 = vpop.permute.xlu0 %309
    %v312 = vmul.f32 %v305, %v310
    %314 = vrot.lane.b32.xlu0 %v312, 32
    %v315 = vpop.permute.xlu0 %314
    %v317 = vadd.f32 %v307, %v315
    %v318 = vtanh.pop %v317
    %320 = vrot.lane.b32.xlu0 %v318, 64
    %v321 = vpop.permute.xlu0 %320
    %v323 = vmul.f32 %v305, %v321
    %325 = vrot.lane.b32.xlu0 %v323, 32
    %v326 = vpop.permute.xlu0 %325
    %328 = vst.msk [vmem:[#allocation2 + $0x2] sm:$0x1] %vm198, %v326
    %v329 = vpack.c.bf16 %v323, %v323
    %331 = vrot.lane.b32.xlu0 %v329, 32
    %v332 = vpop.permute.xlu0 %331
    %v333 = vrot.slane %v122, 3
    %v336 = vsel %vm108, %v332, 0
    %338 = vmatpush.bf16.msra.mxu0 0
    %339 = vmatpush.bf16.msra.mxu0 0
    %340 = vmatpush.bf16.msra.mxu0 0
    %341 = vmatpush.bf16.msra.mxu0 0
    %342 = vmatpush.bf16.msra.mxu0 0
    %343 = vmatpush.bf16.msra.mxu0 0
    %344 = vmatpush.bf16.msra.mxu0 %v138
    %345 = vmatpush.bf16.msra.mxu0 %v137
    %346 = vmatmul.bf16.gmra.mxu0 %v336
    %v347 = vpop.f32.mrf.mxu0
    %v348 = vadd.f32 %v333, %v347
    %v349 = vpop.f32.mrf.mxu0
    %350 = vdwg.mxu0
    %v351 = vxor.u32 %v348, 2147483648
    %v352 = vmul.f32 %v351, 1.442695
    %v353 = vpow.pop %v352
    %v354 = vadd.f32 %v353, 1.0
    %v355 = vrcp.pop %v354
    %v356 = vmul.f32 %v354, %v355
    %v357 = vsub.f32 1.0, %v356
    %v358 = vmul.f32 %v355, %v357
    %v359 = vadd.f32 %v355, %v358
    %vm360 = vweird.f32 %v354
    %vm361 = vweird.f32 %v355
    %vm362 = vmor %vm360, %vm361
    %v363 = vsel %vm362, %v355, %v359
    %v364 = vand.u32 2147483647, %v354
    %vm365 = vcmp.eq.f32.partialorder %v364, 8.507059e+37
    %v366 = vand.u32 %v354, 2147483648
    %v367 = vor.u32 1.1754944e-38, %v366
    %v368 = vsel %vm365, %v367, %v363
    %v369 = vmul.f32 1.0, %v368
    %v370 = vtanh.pop %v348
    %v371 = vmul.f32 %v369, %v317
    %373 = vrot.lane.b32.xlu0 %v370, 64
    %v374 = vpop.permute.xlu0 %373
    %v376 = vmul.f32 %v369, %v374
    %378 = vrot.lane.b32.xlu0 %v376, 32
    %v379 = vpop.permute.xlu0 %378
    %v381 = vadd.f32 %v371, %v379
    %v382 = vtanh.pop %v381
    %384 = vrot.lane.b32.xlu0 %v382, 64
    %v385 = vpop.permute.xlu0 %384
    %v387 = vmul.f32 %v369, %v385
    %389 = vrot.lane.b32.xlu0 %v387, 32
    %v390 = vpop.permute.xlu0 %389
    %392 = vst.msk [vmem:[#allocation2 + $0x3] sm:$0x1] %vm198, %v390
    %v393 = vpack.c.bf16 %v387, %v387
    %395 = vrot.lane.b32.xlu0 %v393, 32
    %v396 = vpop.permute.xlu0 %395
    %v397 = vrot.slane %v122, 4
    %v400 = vsel %vm108, %v396, 0
    %402 = vmatpush.bf16.msra.mxu0 0
    %403 = vmatpush.bf16.msra.mxu0 0
    %404 = vmatpush.bf16.msra.mxu0 0
    %405 = vmatpush.bf16.msra.mxu0 0
    %406 = vmatpush.bf16.msra.mxu0 0
    %407 = vmatpush.bf16.msra.mxu0 0
    %408 = vmatpush.bf16.msra.mxu0 %v138
    %409 = vmatpush.bf16.msra.mxu0 %v137
    %410 = vmatmul.bf16.gmra.mxu0 %v400
    %v411 = vpop.f32.mrf.mxu0
    %v412 = vadd.f32 %v397, %v411
    %v413 = vpop.f32.mrf.mxu0
    %414 = vdwg.mxu0
    %v415 = vxor.u32 %v412, 2147483648
    %v416 = vmul.f32 %v415, 1.442695
    %v417 = vpow.pop %v416
    %v418 = vadd.f32 %v417, 1.0
    %v419 = vrcp.pop %v418
    %v420 = vmul.f32 %v418, %v419
    %v421 = vsub.f32 1.0, %v420
    %v422 = vmul.f32 %v419, %v421
    %v423 = vadd.f32 %v419, %v422
    %vm424 = vweird.f32 %v418
    %vm425 = vweird.f32 %v419
    %vm426 = vmor %vm424, %vm425
    %v427 = vsel %vm426, %v419, %v423
    %v428 = vand.u32 2147483647, %v418
    %vm429 = vcmp.eq.f32.partialorder %v428, 8.507059e+37
    %v430 = vand.u32 %v418, 2147483648
    %v431 = vor.u32 1.1754944e-38, %v430
    %v432 = vsel %vm429, %v431, %v427
    %v433 = vmul.f32 1.0, %v432
    %v434 = vtanh.pop %v412
    %v435 = vmul.f32 %v433, %v381
    %437 = vrot.lane.b32.xlu0 %v434, 64
    %v438 = vpop.permute.xlu0 %437
    %v440 = vmul.f32 %v433, %v438
    %442 = vrot.lane.b32.xlu0 %v440, 32
    %v443 = vpop.permute.xlu0 %442
    %v445 = vadd.f32 %v435, %v443
    %v446 = vtanh.pop %v445
    %448 = vrot.lane.b32.xlu0 %v446, 64
    %v449 = vpop.permute.xlu0 %448
    %v451 = vmul.f32 %v433, %v449
    %453 = vrot.lane.b32.xlu0 %v451, 32
    %v454 = vpop.permute.xlu0 %453
    %456 = vst.msk [vmem:[#allocation2 + $0x4] sm:$0x1] %vm198, %v454
    %v457 = vpack.c.bf16 %v451, %v451
    %459 = vrot.lane.b32.xlu0 %v457, 32
    %v460 = vpop.permute.xlu0 %459
    %v461 = vrot.slane %v122, 5
    %v464 = vsel %vm108, %v460, 0
    %466 = vmatpush.bf16.msra.mxu0 0
    %467 = vmatpush.bf16.msra.mxu0 0
    %468 = vmatpush.bf16.msra.mxu0 0
    %469 = vmatpush.bf16.msra.mxu0 0
    %470 = vmatpush.bf16.msra.mxu0 0
    %471 = vmatpush.bf16.msra.mxu0 0
    %472 = vmatpush.bf16.msra.mxu0 %v138
    %473 = vmatpush.bf16.msra.mxu0 %v137
    %474 = vmatmul.bf16.gmra.mxu0 %v464
    %v475 = vpop.f32.mrf.mxu0
    %v476 = vadd.f32 %v461, %v475
    %v477 = vpop.f32.mrf.mxu0
    %478 = vdwg.mxu0
    %v479 = vxor.u32 %v476, 2147483648
    %v480 = vmul.f32 %v479, 1.442695
    %v481 = vpow.pop %v480
    %v482 = vadd.f32 %v481, 1.0
    %v483 = vrcp.pop %v482
    %v484 = vmul.f32 %v482, %v483
    %v485 = vsub.f32 1.0, %v484
    %v486 = vmul.f32 %v483, %v485
    %v487 = vadd.f32 %v483, %v486
    %vm488 = vweird.f32 %v482
    %vm489 = vweird.f32 %v483
    %vm490 = vmor %vm488, %vm489
    %v491 = vsel %vm490, %v483, %v487
    %v492 = vand.u32 2147483647, %v482
    %vm493 = vcmp.eq.f32.partialorder %v492, 8.507059e+37
    %v494 = vand.u32 %v482, 2147483648
    %v495 = vor.u32 1.1754944e-38, %v494
    %v496 = vsel %vm493, %v495, %v491
    %v497 = vmul.f32 1.0, %v496
    %v498 = vtanh.pop %v476
    %v499 = vmul.f32 %v497, %v445
    %501 = vrot.lane.b32.xlu0 %v498, 64
    %v502 = vpop.permute.xlu0 %501
    %v504 = vmul.f32 %v497, %v502
    %506 = vrot.lane.b32.xlu0 %v504, 32
    %v507 = vpop.permute.xlu0 %506
    %v509 = vadd.f32 %v499, %v507
    %v510 = vtanh.pop %v509
    %512 = vrot.lane.b32.xlu0 %v510, 64
    %v513 = vpop.permute.xlu0 %512
    %v515 = vmul.f32 %v497, %v513
    %517 = vrot.lane.b32.xlu0 %v515, 32
    %v518 = vpop.permute.xlu0 %517
    %520 = vst.msk [vmem:[#allocation2 + $0x5] sm:$0x1] %vm198, %v518
    %v521 = vpack.c.bf16 %v515, %v515
    %523 = vrot.lane.b32.xlu0 %v521, 32
    %v524 = vpop.permute.xlu0 %523
    %v525 = vrot.slane %v122, 6
    %v528 = vsel %vm108, %v524, 0
    %530 = vmatpush.bf16.msra.mxu0 0
    %531 = vmatpush.bf16.msra.mxu0 0
    %532 = vmatpush.bf16.msra.mxu0 0
    %533 = vmatpush.bf16.msra.mxu0 0
    %534 = vmatpush.bf16.msra.mxu0 0
    %535 = vmatpush.bf16.msra.mxu0 0
    %536 = vmatpush.bf16.msra.mxu0 %v138
    %537 = vmatpush.bf16.msra.mxu0 %v137
    %538 = vmatmul.bf16.gmra.mxu0 %v528
    %v539 = vpop.f32.mrf.mxu0
    %v540 = vadd.f32 %v525, %v539
    %v541 = vpop.f32.mrf.mxu0
    %542 = vdwg.mxu0
    %v543 = vxor.u32 %v540, 2147483648
    %v544 = vmul.f32 %v543, 1.442695
    %v545 = vpow.pop %v544
    %v546 = vadd.f32 %v545, 1.0
    %v547 = vrcp.pop %v546
    %v548 = vmul.f32 %v546, %v547
    %v549 = vsub.f32 1.0, %v548
    %v550 = vmul.f32 %v547, %v549
    %v551 = vadd.f32 %v547, %v550
    %vm552 = vweird.f32 %v546
    %vm553 = vweird.f32 %v547
    %vm554 = vmor %vm552, %vm553
    %v555 = vsel %vm554, %v547, %v551
    %v556 = vand.u32 2147483647, %v546
    %vm557 = vcmp.eq.f32.partialorder %v556, 8.507059e+37
    %v558 = vand.u32 %v546, 2147483648
    %v559 = vor.u32 1.1754944e-38, %v558
    %v560 = vsel %vm557, %v559, %v555
    %v561 = vmul.f32 1.0, %v560
    %v562 = vtanh.pop %v540
    %v563 = vmul.f32 %v561, %v509
    %565 = vrot.lane.b32.xlu0 %v562, 64
    %v566 = vpop.permute.xlu0 %565
    %v568 = vmul.f32 %v561, %v566
    %570 = vrot.lane.b32.xlu0 %v568, 32
    %v571 = vpop.permute.xlu0 %570
    %v573 = vadd.f32 %v563, %v571
    %v574 = vtanh.pop %v573
    %576 = vrot.lane.b32.xlu0 %v574, 64
    %v577 = vpop.permute.xlu0 %576
    %v579 = vmul.f32 %v561, %v577
    %581 = vrot.lane.b32.xlu0 %v579, 32
    %v582 = vpop.permute.xlu0 %581
    %584 = vst.msk [vmem:[#allocation2 + $0x6] sm:$0x1] %vm198, %v582
    %v585 = vpack.c.bf16 %v579, %v579
    %587 = vrot.lane.b32.xlu0 %v585, 32
    %v588 = vpop.permute.xlu0 %587
    %v589 = vrot.slane %v122, 7
    %v592 = vsel %vm108, %v588, 0
    %594 = vmatpush.bf16.msra.mxu0 0
    %595 = vmatpush.bf16.msra.mxu0 0
    %596 = vmatpush.bf16.msra.mxu0 0
    %597 = vmatpush.bf16.msra.mxu0 0
    %598 = vmatpush.bf16.msra.mxu0 0
    %599 = vmatpush.bf16.msra.mxu0 0
    %600 = vmatpush.bf16.msra.mxu0 %v138
    %601 = vmatpush.bf16.msra.mxu0 %v137
    %602 = vmatmul.bf16.gmra.mxu0 %v592
    %v603 = vpop.f32.mrf.mxu0
    %v604 = vadd.f32 %v589, %v603
    %v605 = vpop.f32.mrf.mxu0
    %606 = vdwg.mxu0
    %v607 = vxor.u32 %v604, 2147483648
    %v608 = vmul.f32 %v607, 1.442695
    %v609 = vpow.pop %v608
    %v610 = vadd.f32 %v609, 1.0
    %v611 = vrcp.pop %v610
    %v612 = vmul.f32 %v610, %v611
    %v613 = vsub.f32 1.0, %v612
    %v614 = vmul.f32 %v611, %v613
    %v615 = vadd.f32 %v611, %v614
    %vm616 = vweird.f32 %v610
    %vm617 = vweird.f32 %v611
    %vm618 = vmor %vm616, %vm617
    %v619 = vsel %vm618, %v611, %v615
    %v620 = vand.u32 2147483647, %v610
    %vm621 = vcmp.eq.f32.partialorder %v620, 8.507059e+37
    %v622 = vand.u32 %v610, 2147483648
    %v623 = vor.u32 1.1754944e-38, %v622
    %v624 = vsel %vm621, %v623, %v619
    %v625 = vmul.f32 1.0, %v624
    %v626 = vtanh.pop %v604
    %v627 = vmul.f32 %v625, %v573
    %629 = vrot.lane.b32.xlu0 %v626, 64
    %v630 = vpop.permute.xlu0 %629
    %v632 = vmul.f32 %v625, %v630
    %634 = vrot.lane.b32.xlu0 %v632, 32
    %v635 = vpop.permute.xlu0 %634
    %v637 = vadd.f32 %v627, %v635
    %v638 = vtanh.pop %v637
    %640 = vrot.lane.b32.xlu0 %v638, 64
    %v641 = vpop.permute.xlu0 %640
    %v643 = vmul.f32 %v625, %v641
    %645 = vrot.lane.b32.xlu0 %v643, 32
    %v646 = vpop.permute.xlu0 %645
    %648 = vst.msk [vmem:[#allocation2 + $0x7] sm:$0x1] %vm198, %v646
    %v649 = vld [vmem:[#allocation2] sm:$0xff]
    %v650 = vpack.c.bf16 %v649, %v649
    %v651 = vld [vmem:[%s5] sm:$0xf]
    %v652 = vld [vmem:[%s5 + $0x4] sm:$0xf]
    %v653 = vld [vmem:[%s5 + $0x8] sm:$0xf]
    %v654 = vld [vmem:[%s5 + $0xc] sm:$0xf]
    %v655 = vld [vmem:[%s6] sm:$0x1]
    %v657 = vperm.slane %v655, 0
    %v663 = vunpack.c.l.b16 %v651
    %v664 = vunpack.c.l.b16 %v652
    %v665 = vunpack.c.l.b16 %v653
    %v666 = vunpack.c.l.b16 %v654
    %v667 = vpack.c.b16 %v664, %v663
    %v668 = vpack.c.b16 %v666, %v665
    %v672 = vsel %vm108, %v650, 0
    %674 = vmatpush.bf16.msra.mxu0 0
    %675 = vmatpush.bf16.msra.mxu0 0
    %676 = vmatpush.bf16.msra.mxu0 0
    %677 = vmatpush.bf16.msra.mxu0 0
    %678 = vmatpush.bf16.msra.mxu0 0
    %679 = vmatpush.bf16.msra.mxu0 0
    %680 = vmatpush.bf16.msra.mxu0 %v668
    %681 = vmatpush.bf16.msra.mxu0 %v667
    %682 = vmatmul.bf16.gmra.mxu0 %v672
    %v683 = vpop.f32.mrf.mxu0
    %v684 = vadd.f32 %v657, %v683
    %v685 = vpop.f32.mrf.mxu0
    %686 = vdwg.mxu0
    %vm687 = vcmask 64512
    %v688 = vsel %vm687, %v684, -inf
    %689 = vmax.xlane.f32.xlu0 %v688
    %v690 = vpop.xlane.xlu0 %689
    %v691 = vsub.f32 %v684, %v690
    %v692 = vmul.f32 %v691, 1.442695
    %v693 = vpow.pop %v692
    %v694 = vsel %vm687, %v693, 0.0
    %695 = vadd.xlane.f32.xlu0 %v694
    %v696 = vpop.xlane.xlu0 %695
    %v697 = vlog2.pop %v696
    %v698 = vmul.f32 %v697, 0.6931472
    %v699 = vsub.f32 %v691, %v698
    %700 = vst.msk [vmem:[#allocation3] sm:$0xff] %vm687, %v699
    // Predicated region
    $region30: #{lstm_tagger_forward.1} parent=1 // pred_check
      _
    $region31: #{lstm_tagger_forward.1} parent=1 // pred_check_branch
      %702 = sbr.rel (0) target = $region33
    $region32: #{lstm_tagger_forward.1} parent=1 // pred_region
      %704 = vsyncadd [#allocation4], 0
      %s706 = sshll.u32 [#allocation3], 4
      %s707 = int_to_ptr.vmem [resolvable:$true] %s706
      %s708 = sshll.u32 %s7, 4
      %s709 = int_to_ptr.hbm [resolvable:$true] %s708
      %711 = dma.vmem_to_hbm [thread:$0]  %s707, 128, %s709, [#allocation4]
    $region33: #{lstm_tagger_forward.1} parent=1 // pred_fallthru
      _
    // Predicated region
    $region34: #{lstm_tagger_forward.1} parent=1 // pred_check
      _
    $region35: #{lstm_tagger_forward.1} parent=1 // pred_check_branch
      %713 = sbr.rel (0) target = $region37
    $region36: #{lstm_tagger_forward.1} parent=1 // pred_region
      %715 = dma.done [#allocation4], 128
    $region37: #{lstm_tagger_forward.1} parent=1 // pred_fallthru
      _
    %716 = vsyncpa [#allocation4], 1

</llo_original>
